<compile_context>
chip_gen: v5e
topology: v5e:2x2
jax: 0.10.0
libtpu: 0.0.40
codegen_flags: <defaults>
</compile_context>

<pallas_src>
import functools
import math

import jax
import jax.numpy as jnp
from jax import lax
from jax.experimental import pallas as pl
from jax.experimental.pallas import tpu as pltpu


def _make_pe_table(max_seq_len: int, d_model: int) -> jnp.ndarray:
    """Sinusoidal positional-encoding table, identical to the torch __init__."""
    position = jnp.arange(max_seq_len, dtype=jnp.float32)[:, None]          # (L, 1)
    div_term = jnp.exp(jnp.arange(0, d_model, 2, dtype=jnp.float32)
                       * (-math.log(10000.0) / d_model))                     # (D/2,)
    pe = jnp.zeros((max_seq_len, d_model), dtype=jnp.float32)
    pe = pe.at[:, 0::2].set(jnp.sin(position * div_term))
    pe = pe.at[:, 1::2].set(jnp.cos(position * div_term))
    return pe


def _choose_flat_tile(flat_len: int, batch: int, target_bytes: int = 1 << 20) -> int:
    """Largest multiple-of-128 divisor of flat_len with batch*tile*4 ≲ target."""
    if flat_len * batch * 4 <= target_bytes or flat_len % 128 != 0:
        return flat_len                      # small or ragged -> one full block
    limit = max(128, (target_bytes // (4 * max(batch, 1))) // 128 * 128)
    best = 128
    t = 128
    while t <= min(flat_len, limit):
        if flat_len % t == 0:
            best = t
        t += 128
    return best


def _add_pe_kernel(x_ref, pe_ref, o_ref):
    # x_ref: (B, TF), pe_ref: (1, TF) -> sublane broadcast over B.
    y = x_ref[...].astype(jnp.float32) + pe_ref[...].astype(jnp.float32)
    o_ref[...] = y.astype(o_ref.dtype)


def _add_pe_dropout_kernel(x_ref, pe_ref, bits_ref, o_ref, *, threshold: int, scale: float):
    # Inverted dropout: keep with prob (1-p), scale kept values by 1/(1-p).
    # bits are uniform int32 (bitcast of uint32), so P(bits >= threshold) = 1-p.
    y = x_ref[...].astype(jnp.float32) + pe_ref[...].astype(jnp.float32)
    keep = bits_ref[...] >= jnp.int32(threshold)
    y = jnp.where(keep, y * jnp.float32(scale), jnp.float32(0.0))
    o_ref[...] = y.astype(o_ref.dtype)


def positional_encoder_forward(x, pe, *, p=0.1, training=True, rng_key=None):
    """x: (B, S, D), pe: (max_seq_len, D) -> dropout(x + pe[:S]) of shape (B, S, D)."""
    B, S, D = x.shape
    L, Dp = pe.shape
    assert Dp == D and S <= L, "sequence longer than max_seq_len or d_model mismatch"

    F = S * D                                  # flattened (S, D) -> lane-dense axis
    TF = _choose_flat_tile(F, B)
    n_t = F // TF

    xf = x.reshape(B, F)                       # free (contiguous) reshape
    pef = pe.reshape(1, L * D)                 # full table; no pe[:S] copy in HBM

    x_spec = pl.BlockSpec((B, TF), lambda t: (0, t))
    pe_spec = pl.BlockSpec((1, TF), lambda t: (0, t))
    out_spec = pl.BlockSpec((B, TF), lambda t: (0, t))

    cparams = pltpu.CompilerParams(dimension_semantics=("parallel",))
    out_shape = jax.ShapeDtypeStruct((B, F), x.dtype)

    if training and p > 0.0:
        assert p < 1.0, "dropout p must be < 1"
        if rng_key is None:
            rng_key = jax.random.PRNGKey(0)
        bits_u = jax.random.bits(rng_key, (B, F), dtype=jnp.uint32)
        bits = lax.bitcast_convert_type(bits_u, jnp.int32)
        # keep iff int32(bits) >= threshold  ->  P(keep) = 1 - p
        threshold = int(round(p * (1 << 32))) - (1 << 31)
        threshold = max(-(1 << 31), min(threshold, (1 << 31) - 1))
        kernel = functools.partial(_add_pe_dropout_kernel,
                                   threshold=threshold, scale=1.0 / (1.0 - p))
        out = pl.pallas_call(
            kernel,
            out_shape=out_shape,
            grid=(n_t,),
            in_specs=[x_spec, pe_spec, pl.BlockSpec((B, TF), lambda t: (0, t))],
            out_specs=out_spec,
            compiler_params=cparams,
        )(xf, pef, bits)
    else:
        out = pl.pallas_call(
            _add_pe_kernel,
            out_shape=out_shape,
            grid=(n_t,),
            in_specs=[x_spec, pe_spec],
            out_specs=out_spec,
            compiler_params=cparams,
        )(xf, pef)

    return out.reshape(B, S, D)


if __name__ == "__main__":
    B, S, D = 2, 8, 32
    MAX_SEQ_LEN = 100
    DROPOUT_P = 0.1

    key = jax.random.PRNGKey(0)
    k_x, k_drop = jax.random.split(key)
    x = jax.random.normal(k_x, (B, S, D), dtype=jnp.float32)
    pe = _make_pe_table(MAX_SEQ_LEN, D)

    # Eval path (dropout = identity): verify against a plain-JAX reference.
    y_eval = jax.block_until_ready(
        positional_encoder_forward(x, pe, p=DROPOUT_P, training=False))
    ref = x + pe[:S][None, :, :]
    assert jnp.allclose(y_eval, ref, atol=1e-6, rtol=1e-6), "eval-mode mismatch"

    # Training path (dropout active).  Kept entries must equal ref / (1 - p),
    # dropped entries are exactly zero.
    y_train = jax.block_until_ready(
        positional_encoder_forward(x, pe, p=DROPOUT_P, training=True, rng_key=k_drop))
    assert y_train.shape == (B, S, D)
    kept = y_train != 0
    assert jnp.allclose(jnp.where(kept, y_train, 0.0),
                        jnp.where(kept, ref / (1.0 - DROPOUT_P), 0.0),
                        atol=1e-5, rtol=1e-5), "train-mode dropout mismatch"

    print("KERNEL_OK")
</pallas_src>

<mosaic_0001>
module attributes {stable_mosaic.version = 11 : i64} {
  func.func @_add_pe_kernel(%arg0: i32, %arg1: memref<2x256xf32, #tpu.memory_space<vmem>>, %arg2: memref<1x256xf32, #tpu.memory_space<vmem>>, %arg3: memref<2x256xf32, #tpu.memory_space<vmem>>) attributes {dimension_semantics = [#tpu.dimension_semantics<parallel>], iteration_bounds = array<i64: 1>, scalar_prefetch = 0 : i64, scratch_operands = 0 : i64, tpu.core_type = #tpu.core_type<tc>, window_params = [{transform_indices = @transform_0, window_bounds = array<i64: 2, 256>}, {transform_indices = @transform_1, window_bounds = array<i64: 1, 256>}, {transform_indices = @transform_2, window_bounds = array<i64: 2, 256>}]} {
    %c0 = arith.constant 0 : index
    %c0_0 = arith.constant 0 : index
    %0 = vector.load %arg1[%c0, %c0_0] : memref<2x256xf32, #tpu.memory_space<vmem>>, vector<2x256xf32>
    %c0_1 = arith.constant 0 : index
    %c0_2 = arith.constant 0 : index
    %1 = vector.load %arg2[%c0_1, %c0_2] : memref<1x256xf32, #tpu.memory_space<vmem>>, vector<1x256xf32>
    %2 = vector.broadcast %1 : vector<1x256xf32> to vector<2x256xf32>
    %3 = arith.addf %0, %2 : vector<2x256xf32>
    %c0_3 = arith.constant 0 : index
    %c0_4 = arith.constant 0 : index
    %4 = vector.load %arg3[%c0_3, %c0_4] : memref<2x256xf32, #tpu.memory_space<vmem>>, vector<2x256xf32>
    tpu.vector_store %arg3[%c0_3, %c0_4], %3 {strides = array<i32>} : memref<2x256xf32, #tpu.memory_space<vmem>>, vector<2x256xf32>,
    return
  }
  func.func @transform_0(%arg0: i32) -> (i32, i32) {
    %c0_i32 = arith.constant 0 : i32
    %c0_i32_0 = arith.constant 0 : i32
    return %c0_i32, %arg0 : i32, i32
  }
  func.func @transform_1(%arg0: i32) -> (i32, i32) {
    %c0_i32 = arith.constant 0 : i32
    %c0_i32_0 = arith.constant 0 : i32
    return %c0_i32, %arg0 : i32, i32
  }
  func.func @transform_2(%arg0: i32) -> (i32, i32) {
    %c0_i32 = arith.constant 0 : i32
    %c0_i32_0 = arith.constant 0 : i32
    return %c0_i32, %arg0 : i32, i32
  }
}

</mosaic_0001>

<llo_original>
// kernel: tpu_custom_call.1
$region0: #{tpu_custom_call.1}
  #allocation0 [shape = 'u32[]', space=smem, size = 0x4, offset = 0x4, fixed_abs, tag = 'smem constant byte address 0x4 - core index']
  #allocation1 [shape = 'u32[72,128]{1,0:T(1,128)}', space=vmem, size = 0x9000, scoped, tag = 'internal scratch']
  %s0 = inlined_call_operand.hbm [shape: f32[2,256], index: 0, kind: input, shape index: {}]
  %s1 = inlined_call_operand.hbm [shape: f32[1,3200], index: 1, kind: input, shape index: {}]
  %s2 = inlined_call_operand.hbm [shape: f32[2,256], index: 2, kind: output, shape index: {}]
  %s3 = sld [smem:[#allocation0]]
  $region26: #{tpu_custom_call.1} parent=0
    _
  %s5 = ssub.s32 1, %s3
  %s6 = scalar_select 0, %s5, %s3
  $region1: #{tpu_custom_call.1} parent=0
    #allocation2 [shape = 'u8[2048]{0}', space=vmem, size = 0x800, scoped, tag = 'input window, operand 0, single buffered']
    #allocation3 [shape = 's32[1]{0}', space=sflag, size = 0x4, scoped, tag = 'scoped memory for tpu_custom_call.1']
    #allocation4 [shape = 's32[1]{0}', space=sflag, size = 0x4, scoped, tag = 'scoped memory for tpu_custom_call.1']
    #allocation5 [shape = 'u8[1024]{0}', space=vmem, size = 0x400, scoped, tag = 'input window, operand 1, single buffered']
    #allocation6 [shape = 's32[1]{0}', space=sflag, size = 0x4, scoped, tag = 'scoped memory for tpu_custom_call.1']
    #allocation7 [shape = 'u8[2048]{0}', space=vmem, size = 0x800, scoped, tag = 'output window, operand 0, single buffered']
    %7 = vsyncpa [#allocation3], 0
    %8 = vsyncpa [#allocation6], 0
    %9 = vsyncpa [#allocation4], 0
    // Predicated region
    $region2: #{tpu_custom_call.1} parent=1 // pred_check
      _
    $region3: #{tpu_custom_call.1} parent=1 // pred_check_branch
      %11 = sbr.rel (0) target = $region5
    $region4: #{tpu_custom_call.1} parent=1 // pred_region
      %13 = vsyncadd [#allocation3], 0
      %s15 = sshll.u32 %s0, 4
      %s16 = int_to_ptr.hbm [resolvable:$true] %s15
      %s17 = sshll.u32 [#allocation2], 4
      %s18 = int_to_ptr.vmem [resolvable:$true] %s17
      %20 = dma.hbm_to_vmem [thread:$0]  %s16, 64, %s18, [#allocation3]
    $region5: #{tpu_custom_call.1} parent=1 // pred_fallthru
      _
    // Predicated region
    $region6: #{tpu_custom_call.1} parent=1 // pred_check
      _
    $region7: #{tpu_custom_call.1} parent=1 // pred_check_branch
      %22 = sbr.rel (0) target = $region9
    $region8: #{tpu_custom_call.1} parent=1 // pred_region
      %24 = vsyncadd [#allocation6], 0
      %s26 = sshll.u32 %s1, 4
      %s27 = int_to_ptr.hbm [resolvable:$true] %s26
      %s28 = sshll.u32 [#allocation5], 4
      %s29 = int_to_ptr.vmem [resolvable:$true] %s28
      %31 = dma.hbm_to_vmem [thread:$0]  %s27, 32, %s29, [#allocation6]
    $region9: #{tpu_custom_call.1} parent=1 // pred_fallthru
      _
    // Predicated region
    $region10: #{tpu_custom_call.1} parent=1 // pred_check
      _
    $region11: #{tpu_custom_call.1} parent=1 // pred_check_branch
      %33 = sbr.rel (0) target = $region13
    $region12: #{tpu_custom_call.1} parent=1 // pred_region
      %35 = dma.done [#allocation3], 64
    $region13: #{tpu_custom_call.1} parent=1 // pred_fallthru
      _
    // Predicated region
    $region14: #{tpu_custom_call.1} parent=1 // pred_check
      _
    $region15: #{tpu_custom_call.1} parent=1 // pred_check_branch
      %37 = sbr.rel (0) target = $region17
    $region16: #{tpu_custom_call.1} parent=1 // pred_region
      %39 = dma.done [#allocation6], 32
    $region17: #{tpu_custom_call.1} parent=1 // pred_fallthru
      _
    %v40 = vld [vmem:[#allocation2] sm:$0xf]
    %v41 = vld [vmem:[#allocation5] sm:$0x3]
    %v43 = vperm.slane %v41, 0
    %v44 = vperm.slane %v41, 1
    %v45 = vrot.slane %v44, 6
    %vm46 = vcmask 1041408
    %v47 = vsel %vm46, %v43, %v45
    %v49 = vadd.f32 %v40, %v47
    %50 = vst [vmem:[#allocation7] sm:$0xf] %v49
    // Predicated region
    $region18: #{tpu_custom_call.1} parent=1 // pred_check
      _
    $region19: #{tpu_custom_call.1} parent=1 // pred_check_branch
      %52 = sbr.rel (0) target = $region21
    $region20: #{tpu_custom_call.1} parent=1 // pred_region
      %54 = vsyncadd [#allocation4], 0
      %s56 = sshll.u32 [#allocation7], 4
      %s57 = int_to_ptr.vmem [resolvable:$true] %s56
      %s58 = sshll.u32 %s2, 4
      %s59 = int_to_ptr.hbm [resolvable:$true] %s58
      %61 = dma.vmem_to_hbm [thread:$0]  %s57, 64, %s59, [#allocation4]
    $region21: #{tpu_custom_call.1} parent=1 // pred_fallthru
      _
    // Predicated region
    $region22: #{tpu_custom_call.1} parent=1 // pred_check
      _
    $region23: #{tpu_custom_call.1} parent=1 // pred_check_branch
      %63 = sbr.rel (0) target = $region25
    $region24: #{tpu_custom_call.1} parent=1 // pred_region
      %65 = dma.done [#allocation4], 64
    $region25: #{tpu_custom_call.1} parent=1 // pred_fallthru
      _
    %66 = vsyncpa [#allocation3], 1
    %67 = vsyncpa [#allocation6], 1
    %68 = vsyncpa [#allocation4], 1

</llo_original>
